<compile_context>
chip_gen: v6e
topology: v6e:2x2x1
jax: 0.10.0
libtpu: 0.0.40
codegen_flags: <defaults>
</compile_context>

<pallas_src>
import functools

import jax
import jax.numpy as jnp
from jax import lax
from jax.experimental import pallas as pl
from jax.experimental.pallas import tpu as pltpu


def _krasulina_kernel(x_ref, cT_ref, ccross_ref, cT_new_ref, ccross_new_ref,
                      delta_acc, *, eta):
    """One grid step over a batch tile; finalize on the last step."""
    step = pl.program_id(0)
    last = pl.num_programs(0) - 1
    k, d = cT_ref.shape

    @pl.when(step == 0)
    def _():
        delta_acc[...] = jnp.zeros_like(delta_acc)

    x = x_ref[...]         # (tn, d)
    CT = cT_ref[...]       # (k, d)   == C^T
    Cc = ccross_ref[...]   # (k, d)   == C_cross

    # latent^T = x @ C_cross^T                               (tn, k)
    L = lax.dot_general(x, Cc, (((1,), (1,)), ((), ())),
                        preferred_element_type=jnp.float32)
    # residual^T = x - latent^T @ C^T                        (tn, d)
    R = x - jnp.dot(L, CT, preferred_element_type=jnp.float32)

    # alpha = eta / (1 + eta * ||latent||_2 per sample)      (tn, 1)
    nrm = jnp.sqrt(jnp.sum(L * L, axis=1, keepdims=True))
    den = 1.0 + eta * nrm
    inv = pl.reciprocal(den, approx=True)      # EUP slot (effectively free)
    inv = inv * (2.0 - den * inv)              # one Newton step -> ~f32 accuracy
    aL = (eta * inv) * L                       # scale into the SMALL (tn,k) operand

    # delta^T += (alpha * latent)^T @ residual^T  (contract over batch)  (k, d)
    delta_acc[...] += lax.dot_general(aL, R, (((0,), (0,)), ((), ())),
                                      preferred_element_type=jnp.float32)

    @pl.when(step == last)
    def _():
        CnT = CT + delta_acc[...]              # C_new^T  (k, d), lane-dense
        cT_new_ref[...] = CnT                  # in-place write (aliased with C_T)

        # Gram matrix G = C_new^T @ C_new                    (k, k)
        G = lax.dot_general(CnT, CnT, (((1,), (1,)), ((), ())),
                            preferred_element_type=jnp.float32)

        # Unrolled Gauss-Jordan on the tiny (k,k) SPD system only (one vreg);
        # no pivoting needed since G is SPD.  Pivot reciprocals go to the EUP.
        # TODO(synk): torch.linalg.inv_ex adds no regularisation so neither do
        # we; add reg_mat (reg * I) to G here if G may become near-singular.
        rI = lax.broadcasted_iota(jnp.int32, (k, k), 0)
        cI = lax.broadcasted_iota(jnp.int32, (k, k), 1)
        E = (rI == cI).astype(jnp.float32)     # identity -> becomes G^{-1}
        for i in range(k):
            piv = G[i:i + 1, i:i + 1]                    # (1,1) static slice
            ip = pl.reciprocal(piv, approx=True)         # EUP
            ip = ip * (2.0 - piv * ip)                   # Newton -> ~f32
            row_g = G[i:i + 1, :] * ip                   # (1,k)
            row_e = E[i:i + 1, :] * ip                   # (1,k)
            col = G[:, i:i + 1]                          # (k,1)
            G = jnp.where(rI == i, row_g, G - col * row_g)
            E = jnp.where(rI == i, row_e, E - col * row_e)

        # d-wide solve as ONE MXU matmul: C_cross_new = G^{-1} @ C_new^T  (k,d)
        ccross_new_ref[...] = jnp.dot(E, CnT, preferred_element_type=jnp.float32)


def krasulina_pca_forward(x, C_T, C_cross, eta=0.5, batch_tile=None):
    """One fused Krasulina PCA update step.

    Layout: C is carried transposed, C_T = C^T with shape (k, d), so all
    kernel stores are lane-dense.  Returns (C_T_new, C_cross_new), aliased
    in-place with (C_T, C_cross).
    """
    n, d = x.shape
    k, dk = C_T.shape
    assert dk == d and C_cross.shape == (k, d)

    if batch_tile is None:
        batch_tile = n
    assert n % batch_tile == 0
    assert batch_tile == n or batch_tile % 8 == 0, \
        "batch tile must be a multiple of 8 (sublane) or the full batch"
    n_steps = n // batch_tile

    kernel = functools.partial(_krasulina_kernel, eta=float(eta))

    cost = pl.CostEstimate(
        flops=6 * n * d * k + 4 * k * k * d,
        transcendentals=2 * n + 2 * k,                 # EUP reciprocals / sqrt
        bytes_accessed=4 * (n * d + 4 * k * d),
    )

    grid_spec = pltpu.PrefetchScalarGridSpec(
        num_scalar_prefetch=0,
        grid=(n_steps,),
        in_specs=[
            pl.BlockSpec((batch_tile, d), lambda i: (i, 0)),   # x tiles stream
            pl.BlockSpec((k, d), lambda i: (0, 0)),            # C_T (fetched once)
            pl.BlockSpec((k, d), lambda i: (0, 0)),            # C_cross (fetched once)
        ],
        out_specs=(
            pl.BlockSpec((k, d), lambda i: (0, 0)),            # C_T_new (resident)
            pl.BlockSpec((k, d), lambda i: (0, 0)),            # C_cross_new (resident)
        ),
        scratch_shapes=[pltpu.VMEM((k, d), jnp.float32)],      # deltaT accumulator
    )

    return pl.pallas_call(
        kernel,
        out_shape=(jax.ShapeDtypeStruct((k, d), jnp.float32),
                   jax.ShapeDtypeStruct((k, d), jnp.float32)),
        grid_spec=grid_spec,
        compiler_params=pltpu.CompilerParams(
            dimension_semantics=("arbitrary",)),               # carried accumulator
        cost_estimate=cost,
        # In-place buffer update: C_T -> C_T_new, C_cross -> C_cross_new.
        input_output_aliases={1: 0, 2: 1},
    )(x, C_T, C_cross)


def _reference(x, C, C_cross, eta):
    # Pure-JAX mirror of the PyTorch forward (buffers returned, not mutated).
    latent = C_cross @ x.T                        # (k, n)
    residual = x.T - C @ latent                   # (d, n)
    alpha = eta / (1.0 + eta * jnp.linalg.norm(latent, axis=0))  # (n,)
    C_new = C + (alpha[None, :] * residual) @ latent.T
    C_cross_new = jnp.linalg.inv(C_new.T @ C_new) @ C_new.T
    return C_new, C_cross_new


if __name__ == "__main__":
    n_features = 64
    n_components = 8
    batch = 32
    eta = 0.5

    key = jax.random.PRNGKey(0)
    kC, kx = jax.random.split(key)

    # Deterministic "torch.randn" equivalent init for buffer C.
    C0 = jax.random.normal(kC, (n_features, n_components), dtype=jnp.float32)
    C_cross0 = jnp.linalg.inv(C0.T @ C0) @ C0.T
    # reg_mat buffer exists in the module but is unused in forward.
    reg_mat = 1e-7 * jnp.eye(n_components, dtype=jnp.float32)  # noqa: F841

    x = jax.random.normal(kx, (batch, n_features), dtype=jnp.float32)

    # Compute the reference first: the kernel call below donates / aliases the
    # C_T and C_cross buffers (in-place update, like the PyTorch module).
    C_ref, C_cross_ref = _reference(x, C0, C_cross0, eta)
    C_ref, C_cross_ref = jax.block_until_ready((C_ref, C_cross_ref))

    # Kernel uses the lane-dense (k, d) layout for C.
    C_T0 = jnp.asarray(C0.T)

    update_step = jax.jit(
        functools.partial(krasulina_pca_forward, eta=eta, batch_tile=8),
        donate_argnums=(1, 2))
    C_T_new, C_cross_new = update_step(x, C_T0, C_cross0)
    jax.block_until_ready((C_T_new, C_cross_new))

    assert jnp.allclose(C_T_new.T, C_ref, atol=1e-4, rtol=1e-4)
    assert jnp.allclose(C_cross_new, C_cross_ref, atol=1e-4, rtol=1e-4)

    print("KERNEL_OK")
</pallas_src>

<mosaic_0001>
module attributes {stable_mosaic.version = 11 : i64} {
  func.func @_krasulina_kernel(%arg0: i32, %arg1: memref<8x64xf32, #tpu.memory_space<vmem>>, %arg2: memref<8x64xf32, #tpu.memory_space<vmem>>, %arg3: memref<8x64xf32, #tpu.memory_space<vmem>>, %arg4: memref<8x64xf32, #tpu.memory_space<vmem>>, %arg5: memref<8x64xf32, #tpu.memory_space<vmem>>, %arg6: memref<8x64xf32, #tpu.memory_space<vmem>>) attributes {dimension_semantics = [#tpu.dimension_semantics<arbitrary>], iteration_bounds = array<i64: 4>, scalar_prefetch = 0 : i64, scratch_operands = 1 : i64, tpu.core_type = #tpu.core_type<tc>, window_params = [{transform_indices = @transform_0, window_bounds = array<i64: 8, 64>}, {pipeline_mode = #tpu.pipeline_mode<synchronous>, transform_indices = @transform_1, window_bounds = array<i64: 8, 64>}, {pipeline_mode = #tpu.pipeline_mode<synchronous>, transform_indices = @transform_2, window_bounds = array<i64: 8, 64>}, {pipeline_mode = #tpu.pipeline_mode<synchronous>, transform_indices = @transform_3, window_bounds = array<i64: 8, 64>}, {pipeline_mode = #tpu.pipeline_mode<synchronous>, transform_indices = @transform_4, window_bounds = array<i64: 8, 64>}]} {
    %c0_i32 = arith.constant 0 : i32
    %0 = arith.cmpi eq, %arg0, %c0_i32 : i32
    %1 = arith.extui %0 : i1 to i32
    %c0_i32_0 = arith.constant 0 : i32
    %2 = arith.cmpi ne, %1, %c0_i32_0 : i32
    scf.if %2 {
      %cst_18 = arith.constant 0.000000e+00 : f32
      %33 = vector.broadcast %cst_18 : f32 to vector<8x64xf32>
      %c0_19 = arith.constant 0 : index
      %c0_20 = arith.constant 0 : index
      %34 = vector.load %arg6[%c0_19, %c0_20] : memref<8x64xf32, #tpu.memory_space<vmem>>, vector<8x64xf32>
      tpu.vector_store %arg6[%c0_19, %c0_20], %33 {strides = array<i32>} : memref<8x64xf32, #tpu.memory_space<vmem>>, vector<8x64xf32>,
    } else {
    }
    %c0 = arith.constant 0 : index
    %c0_1 = arith.constant 0 : index
    %3 = vector.load %arg1[%c0, %c0_1] : memref<8x64xf32, #tpu.memory_space<vmem>>, vector<8x64xf32>
    %c0_2 = arith.constant 0 : index
    %c0_3 = arith.constant 0 : index
    %4 = vector.load %arg2[%c0_2, %c0_3] : memref<8x64xf32, #tpu.memory_space<vmem>>, vector<8x64xf32>
    %c0_4 = arith.constant 0 : index
    %c0_5 = arith.constant 0 : index
    %5 = vector.load %arg3[%c0_4, %c0_5] : memref<8x64xf32, #tpu.memory_space<vmem>>, vector<8x64xf32>
    %cst = arith.constant dense<0.000000e+00> : vector<8x8xf32>
    %6 = tpu.matmul %3, %5, %cst {dimension_numbers = #tpu.dot_dimension_numbers<[1], [1], [0], [0], [0, 0, 1, 0], [], []>} : vector<8x64xf32>, vector<8x64xf32>, vector<8x8xf32> -> vector<8x8xf32>
    %cst_6 = arith.constant dense<0.000000e+00> : vector<8x64xf32>
    %7 = tpu.matmul %6, %4, %cst_6 {dimension_numbers = #tpu.dot_dimension_numbers<[1], [0], [0], [1], [0, 0, 1, 1], [], []>} : vector<8x8xf32>, vector<8x64xf32>, vector<8x64xf32> -> vector<8x64xf32>
    %8 = arith.subf %3, %7 : vector<8x64xf32>
    %9 = arith.mulf %6, %6 : vector<8x8xf32>
    %cst_7 = arith.constant dense<0.000000e+00> : vector<8xf32>
    %10 = vector.multi_reduction <add>, %9, %cst_7 [1] : vector<8x8xf32> to vector<8xf32>
    %11 = vector.shape_cast %10 : vector<8xf32> to vector<8x1xf32>
    %12 = math.sqrt %11 : vector<8x1xf32>
    %cst_8 = arith.constant 5.000000e-01 : f32
    %13 = vector.broadcast %cst_8 : f32 to vector<8x1xf32>
    %14 = arith.mulf %13, %12 : vector<8x1xf32>
    %cst_9 = arith.constant 1.000000e+00 : f32
    %15 = vector.broadcast %cst_9 : f32 to vector<8x1xf32>
    %16 = arith.addf %15, %14 : vector<8x1xf32>
    %17 = tpu.reciprocal %16 {approx = true} : vector<8x1xf32> -> vector<8x1xf32>
    %18 = arith.mulf %16, %17 : vector<8x1xf32>
    %cst_10 = arith.constant 2.000000e+00 : f32
    %19 = vector.broadcast %cst_10 : f32 to vector<8x1xf32>
    %20 = arith.subf %19, %18 : vector<8x1xf32>
    %21 = arith.mulf %17, %20 : vector<8x1xf32>
    %cst_11 = arith.constant 5.000000e-01 : f32
    %22 = vector.broadcast %cst_11 : f32 to vector<8x1xf32>
    %23 = arith.mulf %22, %21 : vector<8x1xf32>
    %24 = vector.broadcast %23 : vector<8x1xf32> to vector<8x8xf32>
    %25 = arith.mulf %24, %6 : vector<8x8xf32>
    %c0_12 = arith.constant 0 : index
    %c0_13 = arith.constant 0 : index
    %26 = vector.load %arg6[%c0_12, %c0_13] : memref<8x64xf32, #tpu.memory_space<vmem>>, vector<8x64xf32>
    %cst_14 = arith.constant dense<0.000000e+00> : vector<8x64xf32>
    %27 = tpu.matmul %25, %8, %cst_14 {dimension_numbers = #tpu.dot_dimension_numbers<[0], [0], [1], [1], [0, 1, 1, 1], [], []>} : vector<8x8xf32>, vector<8x64xf32>, vector<8x64xf32> -> vector<8x64xf32>
    %28 = arith.addf %26, %27 : vector<8x64xf32>
    %c0_15 = arith.constant 0 : index
    %c0_16 = arith.constant 0 : index
    %29 = vector.load %arg6[%c0_15, %c0_16] : memref<8x64xf32, #tpu.memory_space<vmem>>, vector<8x64xf32>
    tpu.vector_store %arg6[%c0_15, %c0_16], %28 {strides = array<i32>} : memref<8x64xf32, #tpu.memory_space<vmem>>, vector<8x64xf32>,
    %c3_i32 = arith.constant 3 : i32
    %30 = arith.cmpi eq, %arg0, %c3_i32 : i32
    %31 = arith.extui %30 : i1 to i32
    %c0_i32_17 = arith.constant 0 : i32
    %32 = arith.cmpi ne, %31, %c0_i32_17 : i32
    scf.if %32 {
      %c0_18 = arith.constant 0 : index
      %c0_19 = arith.constant 0 : index
      %33 = vector.load %arg6[%c0_18, %c0_19] : memref<8x64xf32, #tpu.memory_space<vmem>>, vector<8x64xf32>
      %34 = arith.addf %4, %33 : vector<8x64xf32>
      %c0_20 = arith.constant 0 : index
      %c0_21 = arith.constant 0 : index
      %35 = vector.load %arg4[%c0_20, %c0_21] : memref<8x64xf32, #tpu.memory_space<vmem>>, vector<8x64xf32>
      tpu.vector_store %arg4[%c0_20, %c0_21], %34 {strides = array<i32>} : memref<8x64xf32, #tpu.memory_space<vmem>>, vector<8x64xf32>,
      %cst_22 = arith.constant dense<0.000000e+00> : vector<8x8xf32>
      %36 = tpu.matmul %34, %34, %cst_22 {dimension_numbers = #tpu.dot_dimension_numbers<[1], [1], [0], [0], [0, 0, 1, 0], [], []>} : vector<8x64xf32>, vector<8x64xf32>, vector<8x8xf32> -> vector<8x8xf32>
      %37 = tpu.iota {dimensions = array<i32: 0>} : vector<8x8xi32>
      %38 = tpu.iota {dimensions = array<i32: 1>} : vector<8x8xi32>
      %39 = arith.cmpi eq, %37, %38 : vector<8x8xi32>
      %40 = arith.extui %39 : vector<8x8xi1> to vector<8x8xi32>
      %41 = arith.sitofp %40 : vector<8x8xi32> to vector<8x8xf32>
      %42 = vector.extract_strided_slice %36 {offsets = [0, 0], sizes = [1, 1], strides = [1, 1]} : vector<8x8xf32> to vector<1x1xf32>
      %43 = tpu.reciprocal %42 {approx = true} : vector<1x1xf32> -> vector<1x1xf32>
      %44 = arith.mulf %42, %43 : vector<1x1xf32>
      %cst_23 = arith.constant 2.000000e+00 : f32
      %45 = vector.broadcast %cst_23 : f32 to vector<1x1xf32>
      %46 = arith.subf %45, %44 : vector<1x1xf32>
      %47 = arith.mulf %43, %46 : vector<1x1xf32>
      %48 = vector.extract_strided_slice %36 {offsets = [0, 0], sizes = [1, 8], strides = [1, 1]} : vector<8x8xf32> to vector<1x8xf32>
      %49 = vector.broadcast %47 : vector<1x1xf32> to vector<1x8xf32>
      %50 = arith.mulf %48, %49 : vector<1x8xf32>
      %51 = vector.extract_strided_slice %41 {offsets = [0, 0], sizes = [1, 8], strides = [1, 1]} : vector<8x8xf32> to vector<1x8xf32>
      %52 = vector.broadcast %47 : vector<1x1xf32> to vector<1x8xf32>
      %53 = arith.mulf %51, %52 : vector<1x8xf32>
      %54 = vector.extract_strided_slice %36 {offsets = [0, 0], sizes = [8, 1], strides = [1, 1]} : vector<8x8xf32> to vector<8x1xf32>
      %c0_i32_24 = arith.constant 0 : i32
      %55 = vector.broadcast %c0_i32_24 : i32 to vector<8x8xi32>
      %56 = arith.cmpi eq, %37, %55 : vector<8x8xi32>
      %57 = vector.broadcast %54 : vector<8x1xf32> to vector<8x8xf32>
      %58 = vector.broadcast %50 : vector<1x8xf32> to vector<8x8xf32>
      %59 = arith.mulf %57, %58 : vector<8x8xf32>
      %60 = arith.subf %36, %59 : vector<8x8xf32>
      %61 = vector.shape_cast %50 : vector<1x8xf32> to vector<1x8xf32>
      %62 = vector.broadcast %61 : vector<1x8xf32> to vector<8x8xf32>
      %63 = arith.select %56, %62, %60 : vector<8x8xi1>, vector<8x8xf32>
      %c0_i32_25 = arith.constant 0 : i32
      %64 = vector.broadcast %c0_i32_25 : i32 to vector<8x8xi32>
      %65 = arith.cmpi eq, %37, %64 : vector<8x8xi32>
      %66 = vector.broadcast %54 : vector<8x1xf32> to vector<8x8xf32>
      %67 = vector.broadcast %53 : vector<1x8xf32> to vector<8x8xf32>
      %68 = arith.mulf %66, %67 : vector<8x8xf32>
      %69 = arith.subf %41, %68 : vector<8x8xf32>
      %70 = vector.shape_cast %53 : vector<1x8xf32> to vector<1x8xf32>
      %71 = vector.broadcast %70 : vector<1x8xf32> to vector<8x8xf32>
      %72 = arith.select %65, %71, %69 : vector<8x8xi1>, vector<8x8xf32>
      %73 = vector.extract_strided_slice %63 {offsets = [1, 1], sizes = [1, 1], strides = [1, 1]} : vector<8x8xf32> to vector<1x1xf32>
      %74 = tpu.reciprocal %73 {approx = true} : vector<1x1xf32> -> vector<1x1xf32>
      %75 = arith.mulf %73, %74 : vector<1x1xf32>
      %cst_26 = arith.constant 2.000000e+00 : f32
      %76 = vector.broadcast %cst_26 : f32 to vector<1x1xf32>
      %77 = arith.subf %76, %75 : vector<1x1xf32>
      %78 = arith.mulf %74, %77 : vector<1x1xf32>
      %79 = vector.extract_strided_slice %63 {offsets = [1, 0], sizes = [1, 8], strides = [1, 1]} : vector<8x8xf32> to vector<1x8xf32>
      %80 = vector.broadcast %78 : vector<1x1xf32> to vector<1x8xf32>
      %81 = arith.mulf %79, %80 : vector<1x8xf32>
      %82 = vector.extract_strided_slice %72 {offsets = [1, 0], sizes = [1, 8], strides = [1, 1]} : vector<8x8xf32> to vector<1x8xf32>
      %83 = vector.broadcast %78 : vector<1x1xf32> to vector<1x8xf32>
      %84 = arith.mulf %82, %83 : vector<1x8xf32>
      %85 = vector.extract_strided_slice %63 {offsets = [0, 1], sizes = [8, 1], strides = [1, 1]} : vector<8x8xf32> to vector<8x1xf32>
      %c1_i32 = arith.constant 1 : i32
      %86 = vector.broadcast %c1_i32 : i32 to vector<8x8xi32>
      %87 = arith.cmpi eq, %37, %86 : vector<8x8xi32>
      %88 = vector.broadcast %85 : vector<8x1xf32> to vector<8x8xf32>
      %89 = vector.broadcast %81 : vector<1x8xf32> to vector<8x8xf32>
      %90 = arith.mulf %88, %89 : vector<8x8xf32>
      %91 = arith.subf %63, %90 : vector<8x8xf32>
      %92 = vector.shape_cast %81 : vector<1x8xf32> to vector<1x8xf32>
      %93 = vector.broadcast %92 : vector<1x8xf32> to vector<8x8xf32>
      %94 = arith.select %87, %93, %91 : vector<8x8xi1>, vector<8x8xf32>
      %c1_i32_27 = arith.constant 1 : i32
      %95 = vector.broadcast %c1_i32_27 : i32 to vector<8x8xi32>
      %96 = arith.cmpi eq, %37, %95 : vector<8x8xi32>
      %97 = vector.broadcast %85 : vector<8x1xf32> to vector<8x8xf32>
      %98 = vector.broadcast %84 : vector<1x8xf32> to vector<8x8xf32>
      %99 = arith.mulf %97, %98 : vector<8x8xf32>
      %100 = arith.subf %72, %99 : vector<8x8xf32>
      %101 = vector.shape_cast %84 : vector<1x8xf32> to vector<1x8xf32>
      %102 = vector.broadcast %101 : vector<1x8xf32> to vector<8x8xf32>
      %103 = arith.select %96, %102, %100 : vector<8x8xi1>, vector<8x8xf32>
      %104 = vector.extract_strided_slice %94 {offsets = [2, 2], sizes = [1, 1], strides = [1, 1]} : vector<8x8xf32> to vector<1x1xf32>
      %105 = tpu.reciprocal %104 {approx = true} : vector<1x1xf32> -> vector<1x1xf32>
      %106 = arith.mulf %104, %105 : vector<1x1xf32>
      %cst_28 = arith.constant 2.000000e+00 : f32
      %107 = vector.broadcast %cst_28 : f32 to vector<1x1xf32>
      %108 = arith.subf %107, %106 : vector<1x1xf32>
      %109 = arith.mulf %105, %108 : vector<1x1xf32>
      %110 = vector.extract_strided_slice %94 {offsets = [2, 0], sizes = [1, 8], strides = [1, 1]} : vector<8x8xf32> to vector<1x8xf32>
      %111 = vector.broadcast %109 : vector<1x1xf32> to vector<1x8xf32>
      %112 = arith.mulf %110, %111 : vector<1x8xf32>
      %113 = vector.extract_strided_slice %103 {offsets = [2, 0], sizes = [1, 8], strides = [1, 1]} : vector<8x8xf32> to vector<1x8xf32>
      %114 = vector.broadcast %109 : vector<1x1xf32> to vector<1x8xf32>
      %115 = arith.mulf %113, %114 : vector<1x8xf32>
      %116 = vector.extract_strided_slice %94 {offsets = [0, 2], sizes = [8, 1], strides = [1, 1]} : vector<8x8xf32> to vector<8x1xf32>
      %c2_i32 = arith.constant 2 : i32
      %117 = vector.broadcast %c2_i32 : i32 to vector<8x8xi32>
      %118 = arith.cmpi eq, %37, %117 : vector<8x8xi32>
      %119 = vector.broadcast %116 : vector<8x1xf32> to vector<8x8xf32>
      %120 = vector.broadcast %112 : vector<1x8xf32> to vector<8x8xf32>
      %121 = arith.mulf %119, %120 : vector<8x8xf32>
      %122 = arith.subf %94, %121 : vector<8x8xf32>
      %123 = vector.shape_cast %112 : vector<1x8xf32> to vector<1x8xf32>
      %124 = vector.broadcast %123 : vector<1x8xf32> to vector<8x8xf32>
      %125 = arith.select %118, %124, %122 : vector<8x8xi1>, vector<8x8xf32>
      %c2_i32_29 = arith.constant 2 : i32
      %126 = vector.broadcast %c2_i32_29 : i32 to vector<8x8xi32>
      %127 = arith.cmpi eq, %37, %126 : vector<8x8xi32>
      %128 = vector.broadcast %116 : vector<8x1xf32> to vector<8x8xf32>
      %129 = vector.broadcast %115 : vector<1x8xf32> to vector<8x8xf32>
      %130 = arith.mulf %128, %129 : vector<8x8xf32>
      %131 = arith.subf %103, %130 : vector<8x8xf32>
      %132 = vector.shape_cast %115 : vector<1x8xf32> to vector<1x8xf32>
      %133 = vector.broadcast %132 : vector<1x8xf32> to vector<8x8xf32>
      %134 = arith.select %127, %133, %131 : vector<8x8xi1>, vector<8x8xf32>
      %135 = vector.extract_strided_slice %125 {offsets = [3, 3], sizes = [1, 1], strides = [1, 1]} : vector<8x8xf32> to vector<1x1xf32>
      %136 = tpu.reciprocal %135 {approx = true} : vector<1x1xf32> -> vector<1x1xf32>
      %137 = arith.mulf %135, %136 : vector<1x1xf32>
      %cst_30 = arith.constant 2.000000e+00 : f32
      %138 = vector.broadcast %cst_30 : f32 to vector<1x1xf32>
      %139 = arith.subf %138, %137 : vector<1x1xf32>
      %140 = arith.mulf %136, %139 : vector<1x1xf32>
      %141 = vector.extract_strided_slice %125 {offsets = [3, 0], sizes = [1, 8], strides = [1, 1]} : vector<8x8xf32> to vector<1x8xf32>
      %142 = vector.broadcast %140 : vector<1x1xf32> to vector<1x8xf32>
      %143 = arith.mulf %141, %142 : vector<1x8xf32>
      %144 = vector.extract_strided_slice %134 {offsets = [3, 0], sizes = [1, 8], strides = [1, 1]} : vector<8x8xf32> to vector<1x8xf32>
      %145 = vector.broadcast %140 : vector<1x1xf32> to vector<1x8xf32>
      %146 = arith.mulf %144, %145 : vector<1x8xf32>
      %147 = vector.extract_strided_slice %125 {offsets = [0, 3], sizes = [8, 1], strides = [1, 1]} : vector<8x8xf32> to vector<8x1xf32>
      %c3_i32_31 = arith.constant 3 : i32
      %148 = vector.broadcast %c3_i32_31 : i32 to vector<8x8xi32>
      %149 = arith.cmpi eq, %37, %148 : vector<8x8xi32>
      %150 = vector.broadcast %147 : vector<8x1xf32> to vector<8x8xf32>
      %151 = vector.broadcast %143 : vector<1x8xf32> to vector<8x8xf32>
      %152 = arith.mulf %150, %151 : vector<8x8xf32>
      %153 = arith.subf %125, %152 : vector<8x8xf32>
      %154 = vector.shape_cast %143 : vector<1x8xf32> to vector<1x8xf32>
      %155 = vector.broadcast %154 : vector<1x8xf32> to vector<8x8xf32>
      %156 = arith.select %149, %155, %153 : vector<8x8xi1>, vector<8x8xf32>
      %c3_i32_32 = arith.constant 3 : i32
      %157 = vector.broadcast %c3_i32_32 : i32 to vector<8x8xi32>
      %158 = arith.cmpi eq, %37, %157 : vector<8x8xi32>
      %159 = vector.broadcast %147 : vector<8x1xf32> to vector<8x8xf32>
      %160 = vector.broadcast %146 : vector<1x8xf32> to vector<8x8xf32>
      %161 = arith.mulf %159, %160 : vector<8x8xf32>
      %162 = arith.subf %134, %161 : vector<8x8xf32>
      %163 = vector.shape_cast %146 : vector<1x8xf32> to vector<1x8xf32>
      %164 = vector.broadcast %163 : vector<1x8xf32> to vector<8x8xf32>
      %165 = arith.select %158, %164, %162 : vector<8x8xi1>, vector<8x8xf32>
      %166 = vector.extract_strided_slice %156 {offsets = [4, 4], sizes = [1, 1], strides = [1, 1]} : vector<8x8xf32> to vector<1x1xf32>
      %167 = tpu.reciprocal %166 {approx = true} : vector<1x1xf32> -> vector<1x1xf32>
      %168 = arith.mulf %166, %167 : vector<1x1xf32>
      %cst_33 = arith.constant 2.000000e+00 : f32
      %169 = vector.broadcast %cst_33 : f32 to vector<1x1xf32>
      %170 = arith.subf %169, %168 : vector<1x1xf32>
      %171 = arith.mulf %167, %170 : vector<1x1xf32>
      %172 = vector.extract_strided_slice %156 {offsets = [4, 0], sizes = [1, 8], strides = [1, 1]} : vector<8x8xf32> to vector<1x8xf32>
      %173 = vector.broadcast %171 : vector<1x1xf32> to vector<1x8xf32>
      %174 = arith.mulf %172, %173 : vector<1x8xf32>
      %175 = vector.extract_strided_slice %165 {offsets = [4, 0], sizes = [1, 8], strides = [1, 1]} : vector<8x8xf32> to vector<1x8xf32>
      %176 = vector.broadcast %171 : vector<1x1xf32> to vector<1x8xf32>
      %177 = arith.mulf %175, %176 : vector<1x8xf32>
      %178 = vector.extract_strided_slice %156 {offsets = [0, 4], sizes = [8, 1], strides = [1, 1]} : vector<8x8xf32> to vector<8x1xf32>
      %c4_i32 = arith.constant 4 : i32
      %179 = vector.broadcast %c4_i32 : i32 to vector<8x8xi32>
      %180 = arith.cmpi eq, %37, %179 : vector<8x8xi32>
      %181 = vector.broadcast %178 : vector<8x1xf32> to vector<8x8xf32>
      %182 = vector.broadcast %174 : vector<1x8xf32> to vector<8x8xf32>
      %183 = arith.mulf %181, %182 : vector<8x8xf32>
      %184 = arith.subf %156, %183 : vector<8x8xf32>
      %185 = vector.shape_cast %174 : vector<1x8xf32> to vector<1x8xf32>
      %186 = vector.broadcast %185 : vector<1x8xf32> to vector<8x8xf32>
      %187 = arith.select %180, %186, %184 : vector<8x8xi1>, vector<8x8xf32>
      %c4_i32_34 = arith.constant 4 : i32
      %188 = vector.broadcast %c4_i32_34 : i32 to vector<8x8xi32>
      %189 = arith.cmpi eq, %37, %188 : vector<8x8xi32>
      %190 = vector.broadcast %178 : vector<8x1xf32> to vector<8x8xf32>
      %191 = vector.broadcast %177 : vector<1x8xf32> to vector<8x8xf32>
      %192 = arith.mulf %190, %191 : vector<8x8xf32>
      %193 = arith.subf %165, %192 : vector<8x8xf32>
      %194 = vector.shape_cast %177 : vector<1x8xf32> to vector<1x8xf32>
      %195 = vector.broadcast %194 : vector<1x8xf32> to vector<8x8xf32>
      %196 = arith.select %189, %195, %193 : vector<8x8xi1>, vector<8x8xf32>
      %197 = vector.extract_strided_slice %187 {offsets = [5, 5], sizes = [1, 1], strides = [1, 1]} : vector<8x8xf32> to vector<1x1xf32>
      %198 = tpu.reciprocal %197 {approx = true} : vector<1x1xf32> -> vector<1x1xf32>
      %199 = arith.mulf %197, %198 : vector<1x1xf32>
      %cst_35 = arith.constant 2.000000e+00 : f32
      %200 = vector.broadcast %cst_35 : f32 to vector<1x1xf32>
      %201 = arith.subf %200, %199 : vector<1x1xf32>
      %202 = arith.mulf %198, %201 : vector<1x1xf32>
      %203 = vector.extract_strided_slice %187 {offsets = [5, 0], sizes = [1, 8], strides = [1, 1]} : vector<8x8xf32> to vector<1x8xf32>
      %204 = vector.broadcast %202 : vector<1x1xf32> to vector<1x8xf32>
      %205 = arith.mulf %203, %204 : vector<1x8xf32>
      %206 = vector.extract_strided_slice %196 {offsets = [5, 0], sizes = [1, 8], strides = [1, 1]} : vector<8x8xf32> to vector<1x8xf32>
      %207 = vector.broadcast %202 : vector<1x1xf32> to vector<1x8xf32>
      %208 = arith.mulf %206, %207 : vector<1x8xf32>
      %209 = vector.extract_strided_slice %187 {offsets = [0, 5], sizes = [8, 1], strides = [1, 1]} : vector<8x8xf32> to vector<8x1xf32>
      %c5_i32 = arith.constant 5 : i32
      %210 = vector.broadcast %c5_i32 : i32 to vector<8x8xi32>
      %211 = arith.cmpi eq, %37, %210 : vector<8x8xi32>
      %212 = vector.broadcast %209 : vector<8x1xf32> to vector<8x8xf32>
      %213 = vector.broadcast %205 : vector<1x8xf32> to vector<8x8xf32>
      %214 = arith.mulf %212, %213 : vector<8x8xf32>
      %215 = arith.subf %187, %214 : vector<8x8xf32>
      %216 = vector.shape_cast %205 : vector<1x8xf32> to vector<1x8xf32>
      %217 = vector.broadcast %216 : vector<1x8xf32> to vector<8x8xf32>
      %218 = arith.select %211, %217, %215 : vector<8x8xi1>, vector<8x8xf32>
      %c5_i32_36 = arith.constant 5 : i32
      %219 = vector.broadcast %c5_i32_36 : i32 to vector<8x8xi32>
      %220 = arith.cmpi eq, %37, %219 : vector<8x8xi32>
      %221 = vector.broadcast %209 : vector<8x1xf32> to vector<8x8xf32>
      %222 = vector.broadcast %208 : vector<1x8xf32> to vector<8x8xf32>
      %223 = arith.mulf %221, %222 : vector<8x8xf32>
      %224 = arith.subf %196, %223 : vector<8x8xf32>
      %225 = vector.shape_cast %208 : vector<1x8xf32> to vector<1x8xf32>
      %226 = vector.broadcast %225 : vector<1x8xf32> to vector<8x8xf32>
      %227 = arith.select %220, %226, %224 : vector<8x8xi1>, vector<8x8xf32>
      %228 = vector.extract_strided_slice %218 {offsets = [6, 6], sizes = [1, 1], strides = [1, 1]} : vector<8x8xf32> to vector<1x1xf32>
      %229 = tpu.reciprocal %228 {approx = true} : vector<1x1xf32> -> vector<1x1xf32>
      %230 = arith.mulf %228, %229 : vector<1x1xf32>
      %cst_37 = arith.constant 2.000000e+00 : f32
      %231 = vector.broadcast %cst_37 : f32 to vector<1x1xf32>
      %232 = arith.subf %231, %230 : vector<1x1xf32>
      %233 = arith.mulf %229, %232 : vector<1x1xf32>
      %234 = vector.extract_strided_slice %218 {offsets = [6, 0], sizes = [1, 8], strides = [1, 1]} : vector<8x8xf32> to vector<1x8xf32>
      %235 = vector.broadcast %233 : vector<1x1xf32> to vector<1x8xf32>
      %236 = arith.mulf %234, %235 : vector<1x8xf32>
      %237 = vector.extract_strided_slice %227 {offsets = [6, 0], sizes = [1, 8], strides = [1, 1]} : vector<8x8xf32> to vector<1x8xf32>
      %238 = vector.broadcast %233 : vector<1x1xf32> to vector<1x8xf32>
      %239 = arith.mulf %237, %238 : vector<1x8xf32>
      %240 = vector.extract_strided_slice %218 {offsets = [0, 6], sizes = [8, 1], strides = [1, 1]} : vector<8x8xf32> to vector<8x1xf32>
      %c6_i32 = arith.constant 6 : i32
      %241 = vector.broadcast %c6_i32 : i32 to vector<8x8xi32>
      %242 = arith.cmpi eq, %37, %241 : vector<8x8xi32>
      %243 = vector.broadcast %240 : vector<8x1xf32> to vector<8x8xf32>
      %244 = vector.broadcast %236 : vector<1x8xf32> to vector<8x8xf32>
      %245 = arith.mulf %243, %244 : vector<8x8xf32>
      %246 = arith.subf %218, %245 : vector<8x8xf32>
      %247 = vector.shape_cast %236 : vector<1x8xf32> to vector<1x8xf32>
      %248 = vector.broadcast %247 : vector<1x8xf32> to vector<8x8xf32>
      %249 = arith.select %242, %248, %246 : vector<8x8xi1>, vector<8x8xf32>
      %c6_i32_38 = arith.constant 6 : i32
      %250 = vector.broadcast %c6_i32_38 : i32 to vector<8x8xi32>
      %251 = arith.cmpi eq, %37, %250 : vector<8x8xi32>
      %252 = vector.broadcast %240 : vector<8x1xf32> to vector<8x8xf32>
      %253 = vector.broadcast %239 : vector<1x8xf32> to vector<8x8xf32>
      %254 = arith.mulf %252, %253 : vector<8x8xf32>
      %255 = arith.subf %227, %254 : vector<8x8xf32>
      %256 = vector.shape_cast %239 : vector<1x8xf32> to vector<1x8xf32>
      %257 = vector.broadcast %256 : vector<1x8xf32> to vector<8x8xf32>
      %258 = arith.select %251, %257, %255 : vector<8x8xi1>, vector<8x8xf32>
      %259 = vector.extract_strided_slice %249 {offsets = [7, 7], sizes = [1, 1], strides = [1, 1]} : vector<8x8xf32> to vector<1x1xf32>
      %260 = tpu.reciprocal %259 {approx = true} : vector<1x1xf32> -> vector<1x1xf32>
      %261 = arith.mulf %259, %260 : vector<1x1xf32>
      %cst_39 = arith.constant 2.000000e+00 : f32
      %262 = vector.broadcast %cst_39 : f32 to vector<1x1xf32>
      %263 = arith.subf %262, %261 : vector<1x1xf32>
      %264 = arith.mulf %260, %263 : vector<1x1xf32>
      %265 = vector.extract_strided_slice %258 {offsets = [7, 0], sizes = [1, 8], strides = [1, 1]} : vector<8x8xf32> to vector<1x8xf32>
      %266 = vector.broadcast %264 : vector<1x1xf32> to vector<1x8xf32>
      %267 = arith.mulf %265, %266 : vector<1x8xf32>
      %268 = vector.extract_strided_slice %249 {offsets = [0, 7], sizes = [8, 1], strides = [1, 1]} : vector<8x8xf32> to vector<8x1xf32>
      %c7_i32 = arith.constant 7 : i32
      %269 = vector.broadcast %c7_i32 : i32 to vector<8x8xi32>
      %270 = arith.cmpi eq, %37, %269 : vector<8x8xi32>
      %271 = vector.broadcast %268 : vector<8x1xf32> to vector<8x8xf32>
      %272 = vector.broadcast %267 : vector<1x8xf32> to vector<8x8xf32>
      %273 = arith.mulf %271, %272 : vector<8x8xf32>
      %274 = arith.subf %258, %273 : vector<8x8xf32>
      %275 = vector.shape_cast %267 : vector<1x8xf32> to vector<1x8xf32>
      %276 = vector.broadcast %275 : vector<1x8xf32> to vector<8x8xf32>
      %277 = arith.select %270, %276, %274 : vector<8x8xi1>, vector<8x8xf32>
      %cst_40 = arith.constant dense<0.000000e+00> : vector<8x64xf32>
      %278 = tpu.matmul %277, %34, %cst_40 {dimension_numbers = #tpu.dot_dimension_numbers<[1], [0], [0], [1], [0, 0, 1, 1], [], []>} : vector<8x8xf32>, vector<8x64xf32>, vector<8x64xf32> -> vector<8x64xf32>
      %c0_41 = arith.constant 0 : index
      %c0_42 = arith.constant 0 : index
      %279 = vector.load %arg5[%c0_41, %c0_42] : memref<8x64xf32, #tpu.memory_space<vmem>>, vector<8x64xf32>
      tpu.vector_store %arg5[%c0_41, %c0_42], %278 {strides = array<i32>} : memref<8x64xf32, #tpu.memory_space<vmem>>, vector<8x64xf32>,
    } else {
    }
    return
  }
  func.func @transform_0(%arg0: i32) -> (i32, i32) {
    %c0_i32 = arith.constant 0 : i32
    %c0_i32_0 = arith.constant 0 : i32
    return %arg0, %c0_i32 : i32, i32
  }
  func.func @transform_1(%arg0: i32) -> (i32, i32) {
    %c0_i32 = arith.constant 0 : i32
    %c0_i32_0 = arith.constant 0 : i32
    %c0_i32_1 = arith.constant 0 : i32
    return %c0_i32, %c0_i32_0 : i32, i32
  }
  func.func @transform_2(%arg0: i32) -> (i32, i32) {
    %c0_i32 = arith.constant 0 : i32
    %c0_i32_0 = arith.constant 0 : i32
    %c0_i32_1 = arith.constant 0 : i32
    return %c0_i32, %c0_i32_0 : i32, i32
  }
  func.func @transform_3(%arg0: i32) -> (i32, i32) {
    %c0_i32 = arith.constant 0 : i32
    %c0_i32_0 = arith.constant 0 : i32
    %c0_i32_1 = arith.constant 0 : i32
    return %c0_i32, %c0_i32_0 : i32, i32
  }
  func.func @transform_4(%arg0: i32) -> (i32, i32) {
    %c0_i32 = arith.constant 0 : i32
    %c0_i32_0 = arith.constant 0 : i32
    %c0_i32_1 = arith.constant 0 : i32
    return %c0_i32, %c0_i32_0 : i32, i32
  }
}

</mosaic_0001>

<llo_original>
// kernel: krasulina_pca_forward.1
$region0: #{krasulina_pca_forward.1}
  #allocation0 [shape = 'u32[]', space=smem, size = 0x4, offset = 0x4, fixed_abs, tag = 'smem constant byte address 0x4 - core index']
  #allocation1 [shape = 'u32[144,128]{1,0:T(1,128)}', space=vmem, size = 0x12000, scoped, tag = 'internal scratch']
  #allocation2 [shape = 'f32[8,64]{1,0:T(8,128)}', space=vmem, size = 0x1000, scoped, tag = 'scratch operand']
  %s0 = inlined_call_operand.hbm [shape: f32[32,64], index: 0, kind: input, shape index: {}]
  %s1 = inlined_call_operand.hbm [shape: f32[8,64], index: 1, kind: input, shape index: {}, may-alias: {1,3}]
  %s2 = inlined_call_operand.hbm [shape: f32[8,64], index: 2, kind: input, shape index: {}, may-alias: {2,4}]
  %s3 = inlined_call_operand.hbm [shape: f32[8,64], index: 3, kind: output, shape index: {0}, may-alias: {1,3}]
  %s4 = inlined_call_operand.hbm [shape: f32[8,64], index: 4, kind: output, shape index: {1}, may-alias: {2,4}]
  %5 = xla_tuple %s3, %s4
  %s6 = sld [smem:[#allocation0]]
  $region73: #{krasulina_pca_forward.1} parent=0
    _
  %s8 = ssub.s32 1, %s6
  %s9 = scalar_select 0, %s8, %s6
  $region1: #{krasulina_pca_forward.1} parent=0
    #allocation3 [shape = 'u8[8192]{0}', space=vmem, size = 0x2000, scoped, tag = 'input window, operand 0']
    #allocation4 [shape = 's32[2]{0}', space=sflag, size = 0x8, scoped, tag = 'scoped memory for krasulina_pca_forward.1']
    #allocation5 [shape = 's32[2]{0}', space=sflag, size = 0x8, scoped, tag = 'scoped memory for krasulina_pca_forward.1']
    #allocation6 [shape = 'u8[4096]{0}', space=vmem, size = 0x1000, scoped, tag = 'input window, operand 1, single buffered']
    #allocation7 [shape = 's32[1]{0}', space=sflag, size = 0x4, scoped, tag = 'scoped memory for krasulina_pca_forward.1']
    #allocation8 [shape = 'u8[4096]{0}', space=vmem, size = 0x1000, scoped, tag = 'input window, operand 2, single buffered']
    #allocation9 [shape = 'u8[4096]{0}', space=vmem, size = 0x1000, scoped, tag = 'output window, operand 0, single buffered']
    #allocation10 [shape = 'u8[4096]{0}', space=vmem, size = 0x1000, scoped, tag = 'output window, operand 1, single buffered']
    #allocation11 [shape = 's32[1]{0}', space=sflag, size = 0x4, scoped, tag = 'scoped memory for krasulina_pca_forward.1']
    %10 = vsyncpa [#allocation4], 0
    %s11 = scalar_lea.sflag [#allocation4], 1
    %12 = vsyncpa %s11, 0
    %13 = vsyncpa [#allocation7], 0
    %14 = vsyncpa [#allocation5], 0
    %15 = vsyncpa [#allocation11], 0
    loop: start=0, step=1, limit=6
    $region2: #{krasulina_pca_forward.1} parent=1 // loop_pre_header
      _
    $region3: #{krasulina_pca_forward.1} parent=1 // loop_header
      %s17 = sphi 0, %s21
      %p18 = scmp.ge.s32.totalorder %s17, 6
      %s27 = sphi 0, %s29
      %s30 = sphi 0, %s27
      %s31 = sphi 0, %s30
      %s47 = sphi 0, %s31
      %s51 = sphi 0, %s51
      %s53 = sphi 0, %s51
      %s54 = sphi 0, %s53
      %s68 = sphi 0, %s54
      %s72 = sphi 0, %s72
      %s74 = sphi 0, %s72
      %s75 = sphi 0, %s74
      %s89 = sphi 0, %s75
      %s93 = sphi 0, %s93
      %s95 = sphi 0, %s93
      %s96 = sphi 0, %s95
      %s110 = sphi 0, %s96
      %s114 = sphi 0, %s114
      %s116 = sphi 0, %s114
      %s117 = sphi 0, %s116
      %s131 = sphi 0, %s117
    $region4: #{krasulina_pca_forward.1} parent=1 // loop_header_branch
      %20 = sbr.rel (%p18) target = $region8
    $region5: #{krasulina_pca_forward.1} parent=1 // loop_body
      %s22 = ssub.s32 %s17, 1
      %s23 = ssub.s32 %s17, 2
      %s24 = sadd.s32 %s17, 1
      %s25 = ssub.s32 %s17, %s24
      %p26 = scmp.eq.s32.totalorder %s25, 0
      %s28 = sadd.s32 %s27, 1
      %s29 = scalar_select %p26, %s27, %s28
      %p32 = pneg %p26
      %p33 = scmp.eq.s32.totalorder %s17, 3
      %p34 = por %p32, %p33
      %p35 = scmp.ne.s32.totalorder %s27, %s30
      %p36 = scmp.eq.s32.totalorder %s17, 0
      %p37 = por %p35, %p36
      %p38 = scmp.ne.s32.totalorder %s27, %s30
      %p39 = scmp.eq.s32.totalorder %s22, 3
      %p40 = por %p38, %p39
      %p41 = scmp.ne.s32.totalorder %s30, %s31
      %p42 = scmp.eq.s32.totalorder %s22, 0
      %p43 = por %p41, %p42
      %p44 = scmp.ne.s32.totalorder %s30, %s31
      %p45 = scmp.eq.s32.totalorder %s23, 3
      %p46 = por %p44, %p45
      %p48 = scmp.ne.s32.totalorder %s31, %s47
      %p49 = scmp.eq.s32.totalorder %s23, 0
      %p50 = por %p48, %p49
      %s52 = sadd.s32 %s51, 1
      %p55 = scmp.eq.s32.totalorder %s17, 3
      %p56 = scmp.ne.s32.totalorder %s51, %s53
      %p57 = scmp.eq.s32.totalorder %s17, 0
      %p58 = por %p56, %p57
      %p59 = scmp.ne.s32.totalorder %s51, %s53
      %p60 = scmp.eq.s32.totalorder %s22, 3
      %p61 = por %p59, %p60
      %p62 = scmp.ne.s32.totalorder %s53, %s54
      %p63 = scmp.eq.s32.totalorder %s22, 0
      %p64 = por %p62, %p63
      %p65 = scmp.ne.s32.totalorder %s53, %s54
      %p66 = scmp.eq.s32.totalorder %s23, 3
      %p67 = por %p65, %p66
      %p69 = scmp.ne.s32.totalorder %s54, %s68
      %p70 = scmp.eq.s32.totalorder %s23, 0
      %p71 = por %p69, %p70
      %s73 = sadd.s32 %s72, 1
      %p76 = scmp.eq.s32.totalorder %s17, 3
      %p77 = scmp.ne.s32.totalorder %s72, %s74
      %p78 = scmp.eq.s32.totalorder %s17, 0
      %p79 = por %p77, %p78
      %p80 = scmp.ne.s32.totalorder %s72, %s74
      %p81 = scmp.eq.s32.totalorder %s22, 3
      %p82 = por %p80, %p81
      %p83 = scmp.ne.s32.totalorder %s74, %s75
      %p84 = scmp.eq.s32.totalorder %s22, 0
      %p85 = por %p83, %p84
      %p86 = scmp.ne.s32.totalorder %s74, %s75
      %p87 = scmp.eq.s32.totalorder %s23, 3
      %p88 = por %p86, %p87
      %p90 = scmp.ne.s32.totalorder %s75, %s89
      %p91 = scmp.eq.s32.totalorder %s23, 0
      %p92 = por %p90, %p91
      %s94 = sadd.s32 %s93, 1
      %p97 = scmp.eq.s32.totalorder %s17, 3
      %p98 = scmp.ne.s32.totalorder %s93, %s95
      %p99 = scmp.eq.s32.totalorder %s17, 0
      %p100 = por %p98, %p99
      %p101 = scmp.ne.s32.totalorder %s93, %s95
      %p102 = scmp.eq.s32.totalorder %s22, 3
      %p103 = por %p101, %p102
      %p104 = scmp.ne.s32.totalorder %s95, %s96
      %p105 = scmp.eq.s32.totalorder %s22, 0
      %p106 = por %p104, %p105
      %p107 = scmp.ne.s32.totalorder %s95, %s96
      %p108 = scmp.eq.s32.totalorder %s23, 3
      %p109 = por %p107, %p108
      %p111 = scmp.ne.s32.totalorder %s96, %s110
      %p112 = scmp.eq.s32.totalorder %s23, 0
      %p113 = por %p111, %p112
      %s115 = sadd.s32 %s114, 1
      %p118 = scmp.eq.s32.totalorder %s17, 3
      %p119 = scmp.ne.s32.totalorder %s114, %s116
      %p120 = scmp.eq.s32.totalorder %s17, 0
      %p121 = por %p119, %p120
      %p122 = scmp.ne.s32.totalorder %s114, %s116
      %p123 = scmp.eq.s32.totalorder %s22, 3
      %p124 = por %p122, %p123
      %p125 = scmp.ne.s32.totalorder %s116, %s117
      %p126 = scmp.eq.s32.totalorder %s22, 0
      %p127 = por %p125, %p126
      %p128 = scmp.ne.s32.totalorder %s116, %s117
      %p129 = scmp.eq.s32.totalorder %s23, 3
      %p130 = por %p128, %p129
      %p132 = scmp.ne.s32.totalorder %s117, %s131
      %p133 = scmp.eq.s32.totalorder %s23, 0
      %p134 = por %p132, %p133
      %p135 = scmp.le.s32.totalorder 1, %s17
      %p136 = scmp.lt.s32.totalorder %s17, 5
      %p137 = pnand %p135, %p136
      %p138 = pneg %p137
      // Predicated region
      $region9: #{krasulina_pca_forward.1} parent=5 // pred_check
        _
      $region10: #{krasulina_pca_forward.1} parent=5 // pred_check_branch
        %140 = sbr.rel (%p137) target = $region12
      $region11: #{krasulina_pca_forward.1} parent=5 // pred_region
        %s141 = ssub.s32 %s17, 1
        // Predicated region
        $region13: #{krasulina_pca_forward.1} parent=11 // pred_check
          %p142 = pneg %p64
        $region14: #{krasulina_pca_forward.1} parent=11 // pred_check_branch
          %144 = sbr.rel (%p142) target = $region16
        $region15: #{krasulina_pca_forward.1} parent=11 // pred_region
          %s146 = ssub.s32 128, 128
          %147 = vsyncadd [#allocation7], %s146
          %s149 = sshll.u32 [#allocation6], 4
          %s150 = int_to_ptr.vmem [resolvable:$true] %s149
          %152 = dma.hbm_to_vmem [thread:$0]  %s1, 128, %s150, [#allocation7]
        $region16: #{krasulina_pca_forward.1} parent=11 // pred_fallthru
          _
        // Predicated region
        $region17: #{krasulina_pca_forward.1} parent=11 // pred_check
          %p153 = pneg %p85
        $region18: #{krasulina_pca_forward.1} parent=11 // pred_check_branch
          %155 = sbr.rel (%p153) target = $region20
        $region19: #{krasulina_pca_forward.1} parent=11 // pred_region
          %s157 = ssub.s32 128, 128
          %158 = vsyncadd [#allocation7], %s157
          %s160 = sshll.u32 [#allocation8], 4
          %s161 = int_to_ptr.vmem [resolvable:$true] %s160
          %163 = dma.hbm_to_vmem [thread:$0]  %s2, 128, %s161, [#allocation7]
        $region20: #{krasulina_pca_forward.1} parent=11 // pred_fallthru
          _
      $region12: #{krasulina_pca_forward.1} parent=5 // pred_fallthru
        _
      %p164 = scmp.lt.s32.totalorder %s17, 4
      // Predicated region
      $region21: #{krasulina_pca_forward.1} parent=5 // pred_check
        %p165 = pneg %p164
      $region22: #{krasulina_pca_forward.1} parent=5 // pred_check_branch
        %167 = sbr.rel (%p165) target = $region24
      $region23: #{krasulina_pca_forward.1} parent=5 // pred_region
        // Predicated region
        $region25: #{krasulina_pca_forward.1} parent=23 // pred_check
          %p168 = pneg %p37
        $region26: #{krasulina_pca_forward.1} parent=23 // pred_check_branch
          %170 = sbr.rel (%p168) target = $region28
        $region27: #{krasulina_pca_forward.1} parent=23 // pred_region
          %s171 = sand.u32 %s27, 1
          %s172 = scalar_lea.sflag [#allocation4], %s171
          %s173 = sand.u32 %s27, 1
          %s174 = smul.addr %s173, 8
          %s175 = scalar_lea.vmem [#allocation3], %s174
          %s177 = ssub.s32 128, 128
          %178 = vsyncadd %s172, %s177
          %s179 = smul.addr %s17, 128
          %s180 = scalar_lea.hbm %s0, %s179
          %s182 = sshll.u32 %s175, 4
          %s183 = int_to_ptr.vmem [resolvable:$true] %s182
          %185 = dma.hbm_to_vmem [thread:$0]  %s180, 128, %s183, %s172
        $region28: #{krasulina_pca_forward.1} parent=23 // pred_fallthru
          _
      $region24: #{krasulina_pca_forward.1} parent=5 // pred_fallthru
        _
      %p186 = scmp.le.s32.totalorder 1, %s17
      %p187 = scmp.lt.s32.totalorder %s17, 5
      %p188 = pnand %p186, %p187
      %p189 = pneg %p188
      // Predicated region
      $region29: #{krasulina_pca_forward.1} parent=5 // pred_check
        _
      $region30: #{krasulina_pca_forward.1} parent=5 // pred_check_branch
        %191 = sbr.rel (%p188) target = $region32
      $region31: #{krasulina_pca_forward.1} parent=5 // pred_region
        %s192 = ssub.s32 %s17, 1
        %s193 = sand.u32 %s30, 1
        %s194 = scalar_lea.sflag [#allocation4], %s193
        %s195 = sand.u32 %s30, 1
        %s196 = smul.addr %s195, 8
        %s197 = scalar_lea.vmem [#allocation3], %s196
        // Predicated region
        $region33: #{krasulina_pca_forward.1} parent=31 // pred_check
          %p198 = pneg %p43
        $region34: #{krasulina_pca_forward.1} parent=31 // pred_check_branch
          %200 = sbr.rel (%p198) target = $region36
        $region35: #{krasulina_pca_forward.1} parent=31 // pred_region
          %201 = dma.done %s194, 128
        $region36: #{krasulina_pca_forward.1} parent=31 // pred_fallthru
          _
        // Predicated region
        $region37: #{krasulina_pca_forward.1} parent=31 // pred_check
          %p202 = pneg %p64
        $region38: #{krasulina_pca_forward.1} parent=31 // pred_check_branch
          %204 = sbr.rel (%p202) target = $region40
        $region39: #{krasulina_pca_forward.1} parent=31 // pred_region
          %205 = dma.done [#allocation7], 128
        $region40: #{krasulina_pca_forward.1} parent=31 // pred_fallthru
          _
        // Predicated region
        $region41: #{krasulina_pca_forward.1} parent=31 // pred_check
          %p206 = pneg %p85
        $region42: #{krasulina_pca_forward.1} parent=31 // pred_check_branch
          %208 = sbr.rel (%p206) target = $region44
        $region43: #{krasulina_pca_forward.1} parent=31 // pred_region
          %209 = dma.done [#allocation7], 128
        $region44: #{krasulina_pca_forward.1} parent=31 // pred_fallthru
          _
        %s210 = sand.u32 %s30, 1
        %s211 = scalar_lea.sflag [#allocation4], %s210
        %s212 = sand.u32 %s30, 1
        %s213 = smul.addr %s212, 8
        %s214 = scalar_lea.vmem [#allocation3], %s213
        %p215 = pneg %p43
        %p216 = pneg %p40
        %p217 = pneg %p64
        %p218 = pneg %p61
        %p219 = pneg %p85
        %p220 = pneg %p82
        %p221 = pneg %p106
        %p222 = pneg %p103
        %p223 = pneg %p127
        %p224 = pneg %p124
        %p225 = scmp.eq.s32.totalorder %s22, 0
        // Predicated region
        $region45: #{krasulina_pca_forward.1} parent=31 // pred_check
          %p226 = pneg %p225
        $region46: #{krasulina_pca_forward.1} parent=31 // pred_check_branch
          %228 = sbr.rel (%p226) target = $region48
        $region47: #{krasulina_pca_forward.1} parent=31 // pred_region
          %vm229 = vcmask 523264
          %230 = vst.msk [vmem:[#allocation2] sm:$0xff] %vm229, 0.0
        $region48: #{krasulina_pca_forward.1} parent=31 // pred_fallthru
          _
        %v231 = vld [vmem:[%s197] sm:$0xff]
        %v232 = vld [vmem:[#allocation6] sm:$0xff]
        %v233 = vld [vmem:[#allocation8] sm:$0xff]
        %vm234 = vcmask 523264
        %v236 = vsel %vm234, %v231, 0
        %v239 = vsel %vm234, %v233, 0
        %241 = vmatprep.subr.mxu0 0.0
        %242 = vmatpush1.xpose.msra.mxu0 0.0
        %243 = vmatprep.subr.mxu0 0.0
        %244 = vmatpush1.xpose.msra.mxu0 0.0
        %245 = vmatprep.subr.mxu0 0.0
        %246 = vmatpush1.xpose.msra.mxu0 0.0
        %247 = vmatprep.subr.mxu0 0.0
        %248 = vmatpush1.xpose.msra.mxu0 0.0
        %249 = vmatprep.subr.mxu0 0.0
        %250 = vmatpush1.xpose.msra.mxu0 0.0
        %251 = vmatprep.subr.mxu0 0.0
        %252 = vmatpush1.xpose.msra.mxu0 0.0
        %253 = vmatprep.subr.mxu0 0.0
        %254 = vmatpush1.xpose.msra.mxu0 0.0
        %255 = vmatprep.subr.mxu0 0.0
        %256 = vmatpush1.xpose.msra.mxu0 0.0
        %257 = vmatprep.subr.mxu0 0.0
        %258 = vmatpush1.xpose.msra.mxu0 0.0
        %259 = vmatprep.subr.mxu0 0.0
        %260 = vmatpush1.xpose.msra.mxu0 0.0
        %261 = vmatprep.subr.mxu0 0.0
        %262 = vmatpush1.xpose.msra.mxu0 0.0
        %263 = vmatprep.subr.mxu0 0.0
        %264 = vmatpush1.xpose.msra.mxu0 0.0
        %265 = vmatprep.subr.mxu0 0.0
        %266 = vmatpush1.xpose.msra.mxu0 0.0
        %267 = vmatprep.subr.mxu0 0.0
        %268 = vmatpush1.xpose.msra.mxu0 0.0
        %269 = vmatprep.subr.mxu0 0.0
        %270 = vmatpush1.xpose.msra.mxu0 0.0
        %271 = vmatprep.subr.mxu0 0.0
        %272 = vmatpush1.xpose.msra.mxu0 %v239
        %273 = vmatprep.subr.mxu0 0.0
        %274 = vmatpush2.xpose.msra.mxu0 0.0
        %275 = vmatprep.subr.mxu0 0.0
        %276 = vmatpush2.xpose.msra.mxu0 0.0
        %277 = vmatprep.subr.mxu0 0.0
        %278 = vmatpush2.xpose.msra.mxu0 0.0
        %279 = vmatprep.subr.mxu0 0.0
        %280 = vmatpush2.xpose.msra.mxu0 0.0
        %281 = vmatprep.subr.mxu0 0.0
        %282 = vmatpush2.xpose.msra.mxu0 0.0
        %283 = vmatprep.subr.mxu0 0.0
        %284 = vmatpush2.xpose.msra.mxu0 0.0
        %285 = vmatprep.subr.mxu0 0.0
        %286 = vmatpush2.xpose.msra.mxu0 0.0
        %287 = vmatprep.subr.mxu0 0.0
        %288 = vmatpush2.xpose.msra.mxu0 0.0
        %289 = vmatprep.subr.mxu0 0.0
        %290 = vmatpush2.xpose.msra.mxu0 0.0
        %291 = vmatprep.subr.mxu0 0.0
        %292 = vmatpush2.xpose.msra.mxu0 0.0
        %293 = vmatprep.subr.mxu0 0.0
        %294 = vmatpush2.xpose.msra.mxu0 0.0
        %295 = vmatprep.subr.mxu0 0.0
        %296 = vmatpush2.xpose.msra.mxu0 0.0
        %297 = vmatprep.subr.mxu0 0.0
        %298 = vmatpush2.xpose.msra.mxu0 0.0
        %299 = vmatprep.subr.mxu0 0.0
        %300 = vmatpush2.xpose.msra.mxu0 0.0
        %301 = vmatprep.subr.mxu0 0.0
        %302 = vmatpush2.xpose.msra.mxu0 0.0
        %303 = vmatprep.subr.mxu0 0.0
        %304 = vmatpush2.xpose.msra.mxu0 0.0
        %305 = vmatprep.mubr.f32.mxu0 0.0
        %306 = vmatmul.mubr.f32.gmra.mxu0 %v236
        %v307 = vpop.f32.mrf.mxu0
        %v308 = vadd.f32 0.0, %v307
        %v309 = vpop.f32.mrf.mxu0
        %310 = vdwg.mxu0
        %vm311 = vcmask 64512
        %v313 = vsel %vm311, %v308, 0
        %315 = vmatprep.subr.mxu0 0.0
        %316 = vmatpush1.msra.mxu0 0.0
        %317 = vmatprep.subr.mxu0 0.0
        %318 = vmatpush1.msra.mxu0 0.0
        %319 = vmatprep.subr.mxu0 0.0
        %320 = vmatpush1.msra.mxu0 0.0
        %321 = vmatprep.subr.mxu0 0.0
        %322 = vmatpush1.msra.mxu0 0.0
        %323 = vmatprep.subr.mxu0 0.0
        %324 = vmatpush1.msra.mxu0 0.0
        %325 = vmatprep.subr.mxu0 0.0
        %326 = vmatpush1.msra.mxu0 0.0
        %327 = vmatprep.subr.mxu0 0.0
        %328 = vmatpush1.msra.mxu0 0.0
        %329 = vmatprep.subr.mxu0 0.0
        %330 = vmatpush1.msra.mxu0 0.0
        %331 = vmatprep.subr.mxu0 0.0
        %332 = vmatpush1.msra.mxu0 0.0
        %333 = vmatprep.subr.mxu0 0.0
        %334 = vmatpush1.msra.mxu0 0.0
        %335 = vmatprep.subr.mxu0 0.0
        %336 = vmatpush1.msra.mxu0 0.0
        %337 = vmatprep.subr.mxu0 0.0
        %338 = vmatpush1.msra.mxu0 0.0
        %339 = vmatprep.subr.mxu0 0.0
        %340 = vmatpush1.msra.mxu0 0.0
        %341 = vmatprep.subr.mxu0 0.0
        %342 = vmatpush1.msra.mxu0 0.0
        %343 = vmatprep.subr.mxu0 0.0
        %344 = vmatpush1.msra.mxu0 0.0
        %345 = vmatprep.subr.mxu0 0.0
        %346 = vmatpush1.msra.mxu0 %v232
        %347 = vmatprep.subr.mxu0 0.0
        %348 = vmatpush2.msra.mxu0 0.0
        %349 = vmatprep.subr.mxu0 0.0
        %350 = vmatpush2.msra.mxu0 0.0
        %351 = vmatprep.subr.mxu0 0.0
        %352 = vmatpush2.msra.mxu0 0.0
        %353 = vmatprep.subr.mxu0 0.0
        %354 = vmatpush2.msra.mxu0 0.0
        %355 = vmatprep.subr.mxu0 0.0
        %356 = vmatpush2.msra.mxu0 0.0
        %357 = vmatprep.subr.mxu0 0.0
        %358 = vmatpush2.msra.mxu0 0.0
        %359 = vmatprep.subr.mxu0 0.0
        %360 = vmatpush2.msra.mxu0 0.0
        %361 = vmatprep.subr.mxu0 0.0
        %362 = vmatpush2.msra.mxu0 0.0
        %363 = vmatprep.subr.mxu0 0.0
        %364 = vmatpush2.msra.mxu0 0.0
        %365 = vmatprep.subr.mxu0 0.0
        %366 = vmatpush2.msra.mxu0 0.0
        %367 = vmatprep.subr.mxu0 0.0
        %368 = vmatpush2.msra.mxu0 0.0
        %369 = vmatprep.subr.mxu0 0.0
        %370 = vmatpush2.msra.mxu0 0.0
        %371 = vmatprep.subr.mxu0 0.0
        %372 = vmatpush2.msra.mxu0 0.0
        %373 = vmatprep.subr.mxu0 0.0
        %374 = vmatpush2.msra.mxu0 0.0
        %375 = vmatprep.subr.mxu0 0.0
        %376 = vmatpush2.msra.mxu0 0.0
        %377 = vmatprep.subr.mxu0 0.0
        %378 = vmatpush2.msra.mxu0 0.0
        %379 = vmatprep.mubr.f32.mxu0 0.0
        %380 = vmatmul.mubr.f32.gmra.mxu0 %v313
        %v381 = vpop.f32.mrf.mxu0
        %v382 = vadd.f32 0.0, %v381
        %v383 = vpop.f32.mrf.mxu0
        %384 = vdwg.mxu0
        %v385 = vsub.f32 %v231, %v382
        %v386 = vmul.f32 %v308, %v308
        %v387 = vsel %vm311, %v386, 0.0
        %388 = vadd.xlane.f32.xlu0 %v387
        %v389 = vpop.xlane.xlu0 %388
        %v390 = vrsqrt.pop %v389
        %v391 = vmul.f32 %v389, %v390
        %vm392 = vcmp.eq.f32.partialorder %v389, inf
        %v393 = vsel %vm392, %v389, %v391
        %vm394 = vcmp.eq.f32.partialorder %v389, 0.0
        %v395 = vand.u32 %v389, 2147483648
        %v396 = vsel %vm394, %v395, %v393
        %v397 = vmul.f32 %v396, 0.5
        %v398 = vadd.f32 %v397, 1.0
        %v399 = vrcp.pop %v398
        %v400 = vmul.f32 %v398, %v399
        %v401 = vsub.f32 2.0, %v400
        %v402 = vmul.f32 %v399, %v401
        %v403 = vmul.f32 %v402, 0.5
        %v404 = vmul.f32 %v403, %v308
        %v405 = vld [vmem:[#allocation2] sm:$0xff]
        %406 = vxpose.xlu0.b32.start [1/16] %v404, 128
        %407 = vxpose.xlu0.b32.cont [2/16] 0.0, 128
        %408 = vxpose.xlu0.b32.cont [3/16] 0.0, 128
        %409 = vxpose.xlu0.b32.cont [4/16] 0.0, 128
        %410 = vxpose.xlu0.b32.cont [5/16] 0.0, 128
        %411 = vxpose.xlu0.b32.cont [6/16] 0.0, 128
        %412 = vxpose.xlu0.b32.cont [7/16] 0.0, 128
        %413 = vxpose.xlu0.b32.cont [8/16] 0.0, 128
        %414 = vxpose.xlu0.b32.cont [9/16] 0.0, 128
        %415 = vxpose.xlu0.b32.cont [10/16] 0.0, 128
        %416 = vxpose.xlu0.b32.cont [11/16] 0.0, 128
        %417 = vxpose.xlu0.b32.cont [12/16] 0.0, 128
        %418 = vxpose.xlu0.b32.cont [13/16] 0.0, 128
        %419 = vxpose.xlu0.b32.cont [14/16] 0.0, 128
        %420 = vxpose.xlu0.b32.cont [15/16] 0.0, 128
        %421 = vxpose.xlu0.b32.end [16/16] 0.0, 128
        %v422 = vpop.trf.xlu0
        %v423 = vpop.trf.xlu0
        %v424 = vpop.trf.xlu0
        %v425 = vpop.trf.xlu0
        %v426 = vpop.trf.xlu0
        %v427 = vpop.trf.xlu0
        %v428 = vpop.trf.xlu0
        %v429 = vpop.trf.xlu0
        %v430 = vpop.trf.xlu0
        %v431 = vpop.trf.xlu0
        %v432 = vpop.trf.xlu0
        %v433 = vpop.trf.xlu0
        %v434 = vpop.trf.xlu0
        %v435 = vpop.trf.xlu0
        %v436 = vpop.trf.xlu0
        %v437 = vpop.trf.xlu0
        %v439 = vsel %vm311, %v422, 0
        %441 = vmatprep.subr.mxu0 0.0
        %442 = vmatpush1.msra.mxu0 0.0
        %443 = vmatprep.subr.mxu0 0.0
        %444 = vmatpush1.msra.mxu0 0.0
        %445 = vmatprep.subr.mxu0 0.0
        %446 = vmatpush1.msra.mxu0 0.0
        %447 = vmatprep.subr.mxu0 0.0
        %448 = vmatpush1.msra.mxu0 0.0
        %449 = vmatprep.subr.mxu0 0.0
        %450 = vmatpush1.msra.mxu0 0.0
        %451 = vmatprep.subr.mxu0 0.0
        %452 = vmatpush1.msra.mxu0 0.0
        %453 = vmatprep.subr.mxu0 0.0
        %454 = vmatpush1.msra.mxu0 0.0
        %455 = vmatprep.subr.mxu0 0.0
        %456 = vmatpush1.msra.mxu0 0.0
        %457 = vmatprep.subr.mxu0 0.0
        %458 = vmatpush1.msra.mxu0 0.0
        %459 = vmatprep.subr.mxu0 0.0
        %460 = vmatpush1.msra.mxu0 0.0
        %461 = vmatprep.subr.mxu0 0.0
        %462 = vmatpush1.msra.mxu0 0.0
        %463 = vmatprep.subr.mxu0 0.0
        %464 = vmatpush1.msra.mxu0 0.0
        %465 = vmatprep.subr.mxu0 0.0
        %466 = vmatpush1.msra.mxu0 0.0
        %467 = vmatprep.subr.mxu0 0.0
        %468 = vmatpush1.msra.mxu0 0.0
        %469 = vmatprep.subr.mxu0 0.0
        %470 = vmatpush1.msra.mxu0 0.0
        %471 = vmatprep.subr.mxu0 0.0
        %472 = vmatpush1.msra.mxu0 %v385
        %473 = vmatprep.subr.mxu0 0.0
        %474 = vmatpush2.msra.mxu0 0.0
        %475 = vmatprep.subr.mxu0 0.0
        %476 = vmatpush2.msra.mxu0 0.0
        %477 = vmatprep.subr.mxu0 0.0
        %478 = vmatpush2.msra.mxu0 0.0
        %479 = vmatprep.subr.mxu0 0.0
        %480 = vmatpush2.msra.mxu0 0.0
        %481 = vmatprep.subr.mxu0 0.0
        %482 = vmatpush2.msra.mxu0 0.0
        %483 = vmatprep.subr.mxu0 0.0
        %484 = vmatpush2.msra.mxu0 0.0
        %485 = vmatprep.subr.mxu0 0.0
        %486 = vmatpush2.msra.mxu0 0.0
        %487 = vmatprep.subr.mxu0 0.0
        %488 = vmatpush2.msra.mxu0 0.0
        %489 = vmatprep.subr.mxu0 0.0
        %490 = vmatpush2.msra.mxu0 0.0
        %491 = vmatprep.subr.mxu0 0.0
        %492 = vmatpush2.msra.mxu0 0.0
        %493 = vmatprep.subr.mxu0 0.0
        %494 = vmatpush2.msra.mxu0 0.0
        %495 = vmatprep.subr.mxu0 0.0
        %496 = vmatpush2.msra.mxu0 0.0
        %497 = vmatprep.subr.mxu0 0.0
        %498 = vmatpush2.msra.mxu0 0.0
        %499 = vmatprep.subr.mxu0 0.0
        %500 = vmatpush2.msra.mxu0 0.0
        %501 = vmatprep.subr.mxu0 0.0
        %502 = vmatpush2.msra.mxu0 0.0
        %503 = vmatprep.subr.mxu0 0.0
        %504 = vmatpush2.msra.mxu0 0.0
        %505 = vmatprep.mubr.f32.mxu0 0.0
        %506 = vmatmul.mubr.f32.gmra.mxu0 %v439
        %v507 = vpop.f32.mrf.mxu0
        %v508 = vadd.f32 0.0, %v507
        %v509 = vpop.f32.mrf.mxu0
        %510 = vdwg.mxu0
        %v511 = vadd.f32 %v405, %v508
        %512 = vst.msk [vmem:[#allocation2] sm:$0xff] %vm234, %v511
        %p513 = scmp.eq.s32.totalorder %s22, 3
        // Predicated region
        $region49: #{krasulina_pca_forward.1} parent=31 // pred_check
          %p514 = pneg %p513
        $region50: #{krasulina_pca_forward.1} parent=31 // pred_check_branch
          %516 = sbr.rel (%p514) target = $region52
        $region51: #{krasulina_pca_forward.1} parent=31 // pred_region
          %v517 = vld [vmem:[#allocation2] sm:$0xff]
          %v518 = vadd.f32 %v232, %v517
          %519 = vst.msk [vmem:[#allocation9] sm:$0xff] %vm234, %v518
          %v521 = vsel %vm234, %v518, 0
          %523 = vmatprep.subr.mxu0 0.0
          %524 = vmatpush1.xpose.msra.mxu0 0.0
          %525 = vmatprep.subr.mxu0 0.0
          %526 = vmatpush1.xpose.msra.mxu0 0.0
          %527 = vmatprep.subr.mxu0 0.0
          %528 = vmatpush1.xpose.msra.mxu0 0.0
          %529 = vmatprep.subr.mxu0 0.0
          %530 = vmatpush1.xpose.msra.mxu0 0.0
          %531 = vmatprep.subr.mxu0 0.0
          %532 = vmatpush1.xpose.msra.mxu0 0.0
          %533 = vmatprep.subr.mxu0 0.0
          %534 = vmatpush1.xpose.msra.mxu0 0.0
          %535 = vmatprep.subr.mxu0 0.0
          %536 = vmatpush1.xpose.msra.mxu0 0.0
          %537 = vmatprep.subr.mxu0 0.0
          %538 = vmatpush1.xpose.msra.mxu0 0.0
          %539 = vmatprep.subr.mxu0 0.0
          %540 = vmatpush1.xpose.msra.mxu0 0.0
          %541 = vmatprep.subr.mxu0 0.0
          %542 = vmatpush1.xpose.msra.mxu0 0.0
          %543 = vmatprep.subr.mxu0 0.0
          %544 = vmatpush1.xpose.msra.mxu0 0.0
          %545 = vmatprep.subr.mxu0 0.0
          %546 = vmatpush1.xpose.msra.mxu0 0.0
          %547 = vmatprep.subr.mxu0 0.0
          %548 = vmatpush1.xpose.msra.mxu0 0.0
          %549 = vmatprep.subr.mxu0 0.0
          %550 = vmatpush1.xpose.msra.mxu0 0.0
          %551 = vmatprep.subr.mxu0 0.0
          %552 = vmatpush1.xpose.msra.mxu0 0.0
          %553 = vmatprep.subr.mxu0 0.0
          %554 = vmatpush1.xpose.msra.mxu0 %v521
          %555 = vmatprep.subr.mxu0 0.0
          %556 = vmatpush2.xpose.msra.mxu0 0.0
          %557 = vmatprep.subr.mxu0 0.0
          %558 = vmatpush2.xpose.msra.mxu0 0.0
          %559 = vmatprep.subr.mxu0 0.0
          %560 = vmatpush2.xpose.msra.mxu0 0.0
          %561 = vmatprep.subr.mxu0 0.0
          %562 = vmatpush2.xpose.msra.mxu0 0.0
          %563 = vmatprep.subr.mxu0 0.0
          %564 = vmatpush2.xpose.msra.mxu0 0.0
          %565 = vmatprep.subr.mxu0 0.0
          %566 = vmatpush2.xpose.msra.mxu0 0.0
          %567 = vmatprep.subr.mxu0 0.0
          %568 = vmatpush2.xpose.msra.mxu0 0.0
          %569 = vmatprep.subr.mxu0 0.0
          %570 = vmatpush2.xpose.msra.mxu0 0.0
          %571 = vmatprep.subr.mxu0 0.0
          %572 = vmatpush2.xpose.msra.mxu0 0.0
          %573 = vmatprep.subr.mxu0 0.0
          %574 = vmatpush2.xpose.msra.mxu0 0.0
          %575 = vmatprep.subr.mxu0 0.0
          %576 = vmatpush2.xpose.msra.mxu0 0.0
          %577 = vmatprep.subr.mxu0 0.0
          %578 = vmatpush2.xpose.msra.mxu0 0.0
          %579 = vmatprep.subr.mxu0 0.0
          %580 = vmatpush2.xpose.msra.mxu0 0.0
          %581 = vmatprep.subr.mxu0 0.0
          %582 = vmatpush2.xpose.msra.mxu0 0.0
          %583 = vmatprep.subr.mxu0 0.0
          %584 = vmatpush2.xpose.msra.mxu0 0.0
          %585 = vmatprep.subr.mxu0 0.0
          %586 = vmatpush2.xpose.msra.mxu0 0.0
          %587 = vmatprep.mubr.f32.mxu0 0.0
          %588 = vmatmul.mubr.f32.gmra.mxu0 %v521
          %v589 = vpop.f32.mrf.mxu0
          %v590 = vadd.f32 0.0, %v589
          %v591 = vpop.f32.mrf.mxu0
          %592 = vdwg.mxu0
          %v593 = vlaneseq
          %v594 = vshrl.u32 %v593, 7
          %v595 = vlaneseq
          %v596 = vand.u32 %v595, 127
          %vm597 = vcmp.eq.s32.totalorder %v594, %v596
          %v598 = vsel %vm597, 1, 0
          %v599 = vcvt.s32.f32 %v598
          %v600 = vrcp.pop %v590
          %v601 = vmul.f32 %v590, %v600
          %v602 = vsub.f32 2.0, %v601
          %v603 = vmul.f32 %v600, %v602
          %605 = vset.pattern.permute.xlu0 0
          %606 = vperm.xlu0 %605, %v603
          %v607 = vpop.permute.xlu0 %606
          %v609 = vmul.f32 %v590, %v607
          %v610 = vmul.f32 %v599, %v607
          %vm611 = vcmp.eq.s32.totalorder %v594, 0
          %613 = vset.pattern.permute.xlu0 0
          %614 = vperm.xlu0 %613, %v590
          %v615 = vpop.permute.xlu0 %614
          %v617 = vlaneseq
          %v618 = vshrl.u32 %v617, 7
          %v619 = vsub.s32 0, %v618
          %v620 = vrot.slane %v609, %v619
          %v621 = vmul.f32 %v615, %v620
          %v622 = vsub.f32 %v590, %v621
          %v623 = vsel %vm611, %v620, %v622
          %v624 = vlaneseq
          %v625 = vshrl.u32 %v624, 7
          %v626 = vsub.s32 0, %v625
          %v627 = vrot.slane %v610, %v626
          %v628 = vmul.f32 %v615, %v627
          %v629 = vsub.f32 %v599, %v628
          %v630 = vsel %vm611, %v627, %v629
          %v631 = vrcp.pop %v623
          %v632 = vmul.f32 %v623, %v631
          %v633 = vsub.f32 2.0, %v632
          %v634 = vmul.f32 %v631, %v633
          %636 = vset.pattern.permute.xlu0 1
          %637 = vperm.xlu0 %636, %v634
          %v638 = vpop.permute.xlu0 %637
          %v640 = vmul.f32 %v623, %v638
          %v641 = vmul.f32 %v630, %v638
          %vm642 = vcmp.eq.s32.totalorder %v594, 1
          %644 = vset.pattern.permute.xlu0 1
          %645 = vperm.xlu0 %644, %v623
          %v646 = vpop.permute.xlu0 %645
          %v648 = vlaneseq
          %v649 = vshrl.u32 %v648, 7
          %v650 = vsub.s32 1, %v649
          %v651 = vrot.slane %v640, %v650
          %v652 = vmul.f32 %v646, %v651
          %v653 = vsub.f32 %v623, %v652
          %v654 = vsel %vm642, %v651, %v653
          %v655 = vlaneseq
          %v656 = vshrl.u32 %v655, 7
          %v657 = vsub.s32 1, %v656
          %v658 = vrot.slane %v641, %v657
          %v659 = vmul.f32 %v646, %v658
          %v660 = vsub.f32 %v630, %v659
          %v661 = vsel %vm642, %v658, %v660
          %v662 = vrcp.pop %v654
          %v663 = vmul.f32 %v654, %v662
          %v664 = vsub.f32 2.0, %v663
          %v665 = vmul.f32 %v662, %v664
          %667 = vset.pattern.permute.xlu0 2
          %668 = vperm.xlu0 %667, %v665
          %v669 = vpop.permute.xlu0 %668
          %v671 = vmul.f32 %v654, %v669
          %v672 = vmul.f32 %v661, %v669
          %vm673 = vcmp.eq.s32.totalorder %v594, 2
          %675 = vset.pattern.permute.xlu0 2
          %676 = vperm.xlu0 %675, %v654
          %v677 = vpop.permute.xlu0 %676
          %v679 = vlaneseq
          %v680 = vshrl.u32 %v679, 7
          %v681 = vsub.s32 2, %v680
          %v682 = vrot.slane %v671, %v681
          %v683 = vmul.f32 %v677, %v682
          %v684 = vsub.f32 %v654, %v683
          %v685 = vsel %vm673, %v682, %v684
          %v686 = vlaneseq
          %v687 = vshrl.u32 %v686, 7
          %v688 = vsub.s32 2, %v687
          %v689 = vrot.slane %v672, %v688
          %v690 = vmul.f32 %v677, %v689
          %v691 = vsub.f32 %v661, %v690
          %v692 = vsel %vm673, %v689, %v691
          %v693 = vrcp.pop %v685
          %v694 = vmul.f32 %v685, %v693
          %v695 = vsub.f32 2.0, %v694
          %v696 = vmul.f32 %v693, %v695
          %698 = vset.pattern.permute.xlu0 3
          %699 = vperm.xlu0 %698, %v696
          %v700 = vpop.permute.xlu0 %699
          %v702 = vmul.f32 %v685, %v700
          %v703 = vmul.f32 %v692, %v700
          %vm704 = vcmp.eq.s32.totalorder %v594, 3
          %706 = vset.pattern.permute.xlu0 3
          %707 = vperm.xlu0 %706, %v685
          %v708 = vpop.permute.xlu0 %707
          %v710 = vlaneseq
          %v711 = vshrl.u32 %v710, 7
          %v712 = vsub.s32 3, %v711
          %v713 = vrot.slane %v702, %v712
          %v714 = vmul.f32 %v708, %v713
          %v715 = vsub.f32 %v685, %v714
          %v716 = vsel %vm704, %v713, %v715
          %v717 = vlaneseq
          %v718 = vshrl.u32 %v717, 7
          %v719 = vsub.s32 3, %v718
          %v720 = vrot.slane %v703, %v719
          %v721 = vmul.f32 %v708, %v720
          %v722 = vsub.f32 %v692, %v721
          %v723 = vsel %vm704, %v720, %v722
          %v724 = vrcp.pop %v716
          %v725 = vmul.f32 %v716, %v724
          %v726 = vsub.f32 2.0, %v725
          %v727 = vmul.f32 %v724, %v726
          %729 = vset.pattern.permute.xlu0 4
          %730 = vperm.xlu0 %729, %v727
          %v731 = vpop.permute.xlu0 %730
          %v733 = vmul.f32 %v716, %v731
          %v734 = vmul.f32 %v723, %v731
          %vm735 = vcmp.eq.s32.totalorder %v594, 4
          %737 = vset.pattern.permute.xlu0 4
          %738 = vperm.xlu0 %737, %v716
          %v739 = vpop.permute.xlu0 %738
          %v741 = vlaneseq
          %v742 = vshrl.u32 %v741, 7
          %v743 = vsub.s32 4, %v742
          %v744 = vrot.slane %v733, %v743
          %v745 = vmul.f32 %v739, %v744
          %v746 = vsub.f32 %v716, %v745
          %v747 = vsel %vm735, %v744, %v746
          %v748 = vlaneseq
          %v749 = vshrl.u32 %v748, 7
          %v750 = vsub.s32 4, %v749
          %v751 = vrot.slane %v734, %v750
          %v752 = vmul.f32 %v739, %v751
          %v753 = vsub.f32 %v723, %v752
          %v754 = vsel %vm735, %v751, %v753
          %v755 = vrcp.pop %v747
          %v756 = vmul.f32 %v747, %v755
          %v757 = vsub.f32 2.0, %v756
          %v758 = vmul.f32 %v755, %v757
          %760 = vset.pattern.permute.xlu0 5
          %761 = vperm.xlu0 %760, %v758
          %v762 = vpop.permute.xlu0 %761
          %v764 = vmul.f32 %v747, %v762
          %v765 = vmul.f32 %v754, %v762
          %vm766 = vcmp.eq.s32.totalorder %v594, 5
          %768 = vset.pattern.permute.xlu0 5
          %769 = vperm.xlu0 %768, %v747
          %v770 = vpop.permute.xlu0 %769
          %v772 = vlaneseq
          %v773 = vshrl.u32 %v772, 7
          %v774 = vsub.s32 5, %v773
          %v775 = vrot.slane %v764, %v774
          %v776 = vmul.f32 %v770, %v775
          %v777 = vsub.f32 %v747, %v776
          %v778 = vsel %vm766, %v775, %v777
          %v779 = vlaneseq
          %v780 = vshrl.u32 %v779, 7
          %v781 = vsub.s32 5, %v780
          %v782 = vrot.slane %v765, %v781
          %v783 = vmul.f32 %v770, %v782
          %v784 = vsub.f32 %v754, %v783
          %v785 = vsel %vm766, %v782, %v784
          %v786 = vrcp.pop %v778
          %v787 = vmul.f32 %v778, %v786
          %v788 = vsub.f32 2.0, %v787
          %v789 = vmul.f32 %v786, %v788
          %791 = vset.pattern.permute.xlu0 6
          %792 = vperm.xlu0 %791, %v789
          %v793 = vpop.permute.xlu0 %792
          %v795 = vmul.f32 %v778, %v793
          %v796 = vmul.f32 %v785, %v793
          %vm797 = vcmp.eq.s32.totalorder %v594, 6
          %799 = vset.pattern.permute.xlu0 6
          %800 = vperm.xlu0 %799, %v778
          %v801 = vpop.permute.xlu0 %800
          %v803 = vlaneseq
          %v804 = vshrl.u32 %v803, 7
          %v805 = vsub.s32 6, %v804
          %v806 = vrot.slane %v795, %v805
          %v807 = vmul.f32 %v801, %v806
          %v808 = vsub.f32 %v778, %v807
          %v809 = vsel %vm797, %v806, %v808
          %v810 = vlaneseq
          %v811 = vshrl.u32 %v810, 7
          %v812 = vsub.s32 6, %v811
          %v813 = vrot.slane %v796, %v812
          %v814 = vmul.f32 %v801, %v813
          %v815 = vsub.f32 %v785, %v814
          %v816 = vsel %vm797, %v813, %v815
          %v817 = vrcp.pop %v809
          %v818 = vmul.f32 %v809, %v817
          %v819 = vsub.f32 2.0, %v818
          %v820 = vmul.f32 %v817, %v819
          %822 = vset.pattern.permute.xlu0 7
          %823 = vperm.xlu0 %822, %v820
          %v824 = vpop.permute.xlu0 %823
          %v826 = vmul.f32 %v816, %v824
          %vm827 = vcmp.eq.s32.totalorder %v594, 7
          %829 = vset.pattern.permute.xlu0 7
          %830 = vperm.xlu0 %829, %v809
          %v831 = vpop.permute.xlu0 %830
          %v833 = vlaneseq
          %v834 = vshrl.u32 %v833, 7
          %v835 = vsub.s32 7, %v834
          %v836 = vrot.slane %v826, %v835
          %v837 = vmul.f32 %v831, %v836
          %v838 = vsub.f32 %v816, %v837
          %v839 = vsel %vm827, %v836, %v838
          %v841 = vsel %vm311, %v839, 0
          %843 = vmatprep.subr.mxu0 0.0
          %844 = vmatpush1.msra.mxu0 0.0
          %845 = vmatprep.subr.mxu0 0.0
          %846 = vmatpush1.msra.mxu0 0.0
          %847 = vmatprep.subr.mxu0 0.0
          %848 = vmatpush1.msra.mxu0 0.0
          %849 = vmatprep.subr.mxu0 0.0
          %850 = vmatpush1.msra.mxu0 0.0
          %851 = vmatprep.subr.mxu0 0.0
          %852 = vmatpush1.msra.mxu0 0.0
          %853 = vmatprep.subr.mxu0 0.0
          %854 = vmatpush1.msra.mxu0 0.0
          %855 = vmatprep.subr.mxu0 0.0
          %856 = vmatpush1.msra.mxu0 0.0
          %857 = vmatprep.subr.mxu0 0.0
          %858 = vmatpush1.msra.mxu0 0.0
          %859 = vmatprep.subr.mxu0 0.0
          %860 = vmatpush1.msra.mxu0 0.0
          %861 = vmatprep.subr.mxu0 0.0
          %862 = vmatpush1.msra.mxu0 0.0
          %863 = vmatprep.subr.mxu0 0.0
          %864 = vmatpush1.msra.mxu0 0.0
          %865 = vmatprep.subr.mxu0 0.0
          %866 = vmatpush1.msra.mxu0 0.0
          %867 = vmatprep.subr.mxu0 0.0
          %868 = vmatpush1.msra.mxu0 0.0
          %869 = vmatprep.subr.mxu0 0.0
          %870 = vmatpush1.msra.mxu0 0.0
          %871 = vmatprep.subr.mxu0 0.0
          %872 = vmatpush1.msra.mxu0 0.0
          %873 = vmatprep.subr.mxu0 0.0
          %874 = vmatpush1.msra.mxu0 %v518
          %875 = vmatprep.subr.mxu0 0.0
          %876 = vmatpush2.msra.mxu0 0.0
          %877 = vmatprep.subr.mxu0 0.0
          %878 = vmatpush2.msra.mxu0 0.0
          %879 = vmatprep.subr.mxu0 0.0
          %880 = vmatpush2.msra.mxu0 0.0
          %881 = vmatprep.subr.mxu0 0.0
          %882 = vmatpush2.msra.mxu0 0.0
          %883 = vmatprep.subr.mxu0 0.0
          %884 = vmatpush2.msra.mxu0 0.0
          %885 = vmatprep.subr.mxu0 0.0
          %886 = vmatpush2.msra.mxu0 0.0
          %887 = vmatprep.subr.mxu0 0.0
          %888 = vmatpush2.msra.mxu0 0.0
          %889 = vmatprep.subr.mxu0 0.0
          %890 = vmatpush2.msra.mxu0 0.0
          %891 = vmatprep.subr.mxu0 0.0
          %892 = vmatpush2.msra.mxu0 0.0
          %893 = vmatprep.subr.mxu0 0.0
          %894 = vmatpush2.msra.mxu0 0.0
          %895 = vmatprep.subr.mxu0 0.0
          %896 = vmatpush2.msra.mxu0 0.0
          %897 = vmatprep.subr.mxu0 0.0
          %898 = vmatpush2.msra.mxu0 0.0
          %899 = vmatprep.subr.mxu0 0.0
          %900 = vmatpush2.msra.mxu0 0.0
          %901 = vmatprep.subr.mxu0 0.0
          %902 = vmatpush2.msra.mxu0 0.0
          %903 = vmatprep.subr.mxu0 0.0
          %904 = vmatpush2.msra.mxu0 0.0
          %905 = vmatprep.subr.mxu0 0.0
          %906 = vmatpush2.msra.mxu0 0.0
          %907 = vmatprep.mubr.f32.mxu0 0.0
          %908 = vmatmul.mubr.f32.gmra.mxu0 %v841
          %v909 = vpop.f32.mrf.mxu0
          %v910 = vadd.f32 0.0, %v909
          %v911 = vpop.f32.mrf.mxu0
          %912 = vdwg.mxu0
          %913 = vst.msk [vmem:[#allocation10] sm:$0xff] %vm234, %v910
        $region52: #{krasulina_pca_forward.1} parent=31 // pred_fallthru
          _
        // Predicated region
        $region53: #{krasulina_pca_forward.1} parent=31 // pred_check
          %p914 = pneg %p103
        $region54: #{krasulina_pca_forward.1} parent=31 // pred_check_branch
          %916 = sbr.rel (%p914) target = $region56
        $region55: #{krasulina_pca_forward.1} parent=31 // pred_region
          %s918 = ssub.s32 128, 128
          %919 = vsyncadd [#allocation5], %s918
          %s921 = sshll.u32 [#allocation9], 4
          %s922 = int_to_ptr.vmem [resolvable:$true] %s921
          %924 = dma.vmem_to_hbm [thread:$0]  %s922, 128, %s3, [#allocation5]
        $region56: #{krasulina_pca_forward.1} parent=31 // pred_fallthru
          _
        // Predicated region
        $region57: #{krasulina_pca_forward.1} parent=31 // pred_check
          %p925 = pneg %p124
        $region58: #{krasulina_pca_forward.1} parent=31 // pred_check_branch
          %927 = sbr.rel (%p925) target = $region60
        $region59: #{krasulina_pca_forward.1} parent=31 // pred_region
          %s929 = ssub.s32 128, 128
          %930 = vsyncadd [#allocation11], %s929
          %s932 = sshll.u32 [#allocation10], 4
          %s933 = int_to_ptr.vmem [resolvable:$true] %s932
          %935 = dma.vmem_to_hbm [thread:$0]  %s933, 128, %s4, [#allocation11]
        $region60: #{krasulina_pca_forward.1} parent=31 // pred_fallthru
          _
        // Predicated region
        $region61: #{krasulina_pca_forward.1} parent=31 // pred_check
          %p936 = pneg %p103
        $region62: #{krasulina_pca_forward.1} parent=31 // pred_check_branch
          %938 = sbr.rel (%p936) target = $region64
        $region63: #{krasulina_pca_forward.1} parent=31 // pred_region
          %939 = dma.done [#allocation5], 128
        $region64: #{krasulina_pca_forward.1} parent=31 // pred_fallthru
          _
        // Predicated region
        $region65: #{krasulina_pca_forward.1} parent=31 // pred_check
          %p940 = pneg %p124
        $region66: #{krasulina_pca_forward.1} parent=31 // pred_check_branch
          %942 = sbr.rel (%p940) target = $region68
        $region67: #{krasulina_pca_forward.1} parent=31 // pred_region
          %943 = dma.done [#allocation11], 128
        $region68: #{krasulina_pca_forward.1} parent=31 // pred_fallthru
          _
      $region32: #{krasulina_pca_forward.1} parent=5 // pred_fallthru
        _
      %p944 = scmp.le.s32.totalorder 2, %s17
      // Predicated region
      $region69: #{krasulina_pca_forward.1} parent=5 // pred_check
        %p945 = pneg %p944
      $region70: #{krasulina_pca_forward.1} parent=5 // pred_check_branch
        %947 = sbr.rel (%p945) target = $region72
      $region71: #{krasulina_pca_forward.1} parent=5 // pred_region
        %s948 = ssub.s32 %s17, 2
      $region72: #{krasulina_pca_forward.1} parent=5 // pred_fallthru
        _
    $region6: #{krasulina_pca_forward.1} parent=1 // loop_footer
      %s21 = sadd.s32 1, %s17
    $region7: #{krasulina_pca_forward.1} parent=1 // loop_footer_branch
      %16 = sbr.rel target = $region3
    $region8: #{krasulina_pca_forward.1} parent=1 // loop_exit
      _
    %949 = vsyncpa [#allocation4], 1
    %s950 = scalar_lea.sflag [#allocation4], 1
    %951 = vsyncpa %s950, 1
    %952 = vsyncpa [#allocation7], 1
    %953 = vsyncpa [#allocation5], 1
    %s954 = scalar_lea.sflag [#allocation5], 1
    %955 = vsyncpa %s954, 1
    %956 = vsyncpa [#allocation11], 1

</llo_original>
